<compile_context>
chip_gen: v5e
topology: v5e:2x2
jax: 0.10.0
libtpu: 0.0.40
codegen_flags: <defaults>
</compile_context>

<pallas_src>
import jax
import jax.numpy as jnp
from jax.experimental import pallas as pl
from jax.experimental.pallas import tpu as pltpu


def _clm_proj_kernel(x_ref, w_ref, b_ref, o_ref):
    """Fused CLM heads: o = x @ W_cat + b_cat (MXU matmul, f32 accumulation)."""
    acc = jnp.dot(x_ref[...], w_ref[...], preferred_element_type=jnp.float32)
    o_ref[...] = (acc + b_ref[...].astype(jnp.float32)).astype(o_ref.dtype)


def _fused_proj(x, w, b, *, out_dtype, tm_max=256, tn_max=256):
    """x: (M, H), w: (H, Np), b: (1, Np) with Np % 128 == 0 -> (M, Np)."""
    M, H = x.shape
    Np = w.shape[1]
    assert Np % 128 == 0, "head dim must be padded to a lane-dense multiple of 128"

    # Row tile: full M for small inputs (full-dim escape hatch), else 256.
    tm = M if M <= tm_max else tm_max
    # Col tile: lane-dense 128/256; Np is a multiple of 128 so tn always divides.
    if Np <= tn_max:
        tn = Np
    elif Np % tn_max == 0:
        tn = tn_max
    else:
        tn = 128

    grid = (pl.cdiv(M, tm), Np // tn)

    cost = pl.CostEstimate(
        flops=2 * M * H * Np,
        transcendentals=0,
        bytes_accessed=(x.size * x.dtype.itemsize
                        + w.size * w.dtype.itemsize
                        + b.size * b.dtype.itemsize
                        + M * Np * jnp.dtype(out_dtype).itemsize),
    )

    return pl.pallas_call(
        _clm_proj_kernel,
        out_shape=jax.ShapeDtypeStruct((M, Np), out_dtype),
        grid=grid,
        in_specs=[
            pl.BlockSpec((tm, H), lambda i, j: (i, 0)),   # activations (row tile)
            pl.BlockSpec((H, tn), lambda i, j: (0, j)),   # fused weights (col tile)
            pl.BlockSpec((1, tn), lambda i, j: (0, j)),   # fused bias   (col tile)
        ],
        out_specs=pl.BlockSpec((tm, tn), lambda i, j: (i, j)),
        compiler_params=pltpu.CompilerParams(
            dimension_semantics=("parallel", "parallel"),
            vmem_limit_bytes=48 * 1024 * 1024,            # headroom for v7x 64 MiB VMEM
        ),
        cost_estimate=cost,
    )(x, w, b)


def clm_forward(hidden_states, weights, biases, *, compute_dtype=None):
    """Pallas equivalent of CLM.forward.

    hidden_states: (B, S, H)  — stands in for y.hidden_states[-1]
    weights[i]:    (H, n_tokens[i])   (transposed nn.Linear weight)
    biases[i]:     (n_tokens[i],)
    compute_dtype: optionally jnp.bfloat16 for the matmul operands (v6e/v7x);
                   accumulation and bias add stay f32 either way.
    returns: list of (B, S-1, n_tokens[i])
    """
    B, S, H = hidden_states.shape
    n_tokens = [int(w.shape[1]) for w in weights]
    n_total = sum(n_tokens)
    n_pad = ((n_total + 127) // 128) * 128

    # Fuse all heads into one lane-dense, zero-padded weight/bias.
    w_cat = jnp.concatenate(weights, axis=1)
    b_cat = jnp.concatenate([b.reshape(-1) for b in biases])
    if n_pad > n_total:
        w_cat = jnp.pad(w_cat, ((0, 0), (0, n_pad - n_total)))
        b_cat = jnp.pad(b_cat, (0, n_pad - n_total))
    b_cat = b_cat.reshape(1, n_pad).astype(jnp.float32)

    # No input-side copy: (B, S, H) -> (B*S, H) is a free contiguous reshape;
    # the ":-1" seq slice is applied to the (small) output instead.
    x = hidden_states.reshape(B * S, H)
    if compute_dtype is not None:
        x = x.astype(compute_dtype)
        w_cat = w_cat.astype(compute_dtype)

    out = _fused_proj(x, w_cat, b_cat, out_dtype=hidden_states.dtype)
    out = out.reshape(B, S, n_pad)[:, :-1, :]   # CLM: drop the LAST position

    ys, off = [], 0
    for n in n_tokens:
        ys.append(out[..., off:off + n])
        off += n
    return ys


def init_clm_params(key, hidden_size, n_tokens, dtype=jnp.float32):
    """Deterministic synthetic init (uniform ~ nn.Linear default bound)."""
    weights, biases = [], []
    bound = 1.0 / (hidden_size ** 0.5)
    for n in n_tokens:
        kw, kb, key = jax.random.split(key, 3)
        weights.append(jax.random.uniform(kw, (hidden_size, n), dtype, -bound, bound))
        biases.append(jax.random.uniform(kb, (n,), dtype, -bound, bound))
    return weights, biases


if __name__ == "__main__":
    # CP MidiFormer uses 4 compound-word token types (e.g. Bar/Position/Pitch/Duration).
    B, S, H = 2, 9, 32          # batch, seq (incl. final token that CLM drops), hidden
    n_tokens = [4, 16, 48, 24]  # small synthetic vocab sizes per type

    key = jax.random.PRNGKey(0)
    k_hid, k_par = jax.random.split(key)
    hidden_states = jax.random.normal(k_hid, (B, S, H), jnp.float32)
    weights, biases = init_clm_params(k_par, H, n_tokens)

    # TODO(synk): the transformer backbone producing y.hidden_states[-1] is outside
    # this module; the kernel consumes the last hidden-state tensor directly.
    outs = clm_forward(hidden_states, weights, biases)
    outs = [jax.block_until_ready(o) for o in outs]

    # sanity check against plain-JAX reference (CLM drops the LAST position)
    y = hidden_states[:, :-1, :]
    for o, w, b in zip(outs, weights, biases):
        ref = jnp.einsum("bsh,hn->bsn", y, w) + b
        assert o.shape == ref.shape, (o.shape, ref.shape)
        assert jnp.allclose(o, ref, atol=1e-5, rtol=1e-5)

    print("KERNEL_OK")
</pallas_src>

<mosaic_0001>
module attributes {stable_mosaic.version = 11 : i64} {
  func.func @_clm_proj_kernel(%arg0: i32, %arg1: i32, %arg2: memref<18x32xf32, #tpu.memory_space<vmem>>, %arg3: memref<32x128xf32, #tpu.memory_space<vmem>>, %arg4: memref<1x128xf32, #tpu.memory_space<vmem>>, %arg5: memref<18x128xf32, #tpu.memory_space<vmem>>) attributes {dimension_semantics = [#tpu.dimension_semantics<parallel>, #tpu.dimension_semantics<parallel>], iteration_bounds = array<i64: 1, 1>, scalar_prefetch = 0 : i64, scratch_operands = 0 : i64, tpu.core_type = #tpu.core_type<tc>, window_params = [{transform_indices = @transform_0, window_bounds = array<i64: 18, 32>}, {transform_indices = @transform_1, window_bounds = array<i64: 32, 128>}, {transform_indices = @transform_2, window_bounds = array<i64: 1, 128>}, {transform_indices = @transform_3, window_bounds = array<i64: 18, 128>}]} {
    %c0 = arith.constant 0 : index
    %c0_0 = arith.constant 0 : index
    %0 = vector.load %arg2[%c0, %c0_0] : memref<18x32xf32, #tpu.memory_space<vmem>>, vector<18x32xf32>
    %c0_1 = arith.constant 0 : index
    %c0_2 = arith.constant 0 : index
    %1 = vector.load %arg3[%c0_1, %c0_2] : memref<32x128xf32, #tpu.memory_space<vmem>>, vector<32x128xf32>
    %cst = arith.constant dense<0.000000e+00> : vector<18x128xf32>
    %2 = tpu.matmul %0, %1, %cst {dimension_numbers = #tpu.dot_dimension_numbers<[1], [0], [0], [1], [0, 0, 1, 1], [], []>} : vector<18x32xf32>, vector<32x128xf32>, vector<18x128xf32> -> vector<18x128xf32>
    %c0_3 = arith.constant 0 : index
    %c0_4 = arith.constant 0 : index
    %3 = vector.load %arg4[%c0_3, %c0_4] : memref<1x128xf32, #tpu.memory_space<vmem>>, vector<1x128xf32>
    %4 = vector.broadcast %3 : vector<1x128xf32> to vector<18x128xf32>
    %5 = arith.addf %2, %4 : vector<18x128xf32>
    %c0_5 = arith.constant 0 : index
    %c0_6 = arith.constant 0 : index
    %6 = vector.load %arg5[%c0_5, %c0_6] : memref<18x128xf32, #tpu.memory_space<vmem>>, vector<18x128xf32>
    tpu.vector_store %arg5[%c0_5, %c0_6], %5 {strides = array<i32>} : memref<18x128xf32, #tpu.memory_space<vmem>>, vector<18x128xf32>,
    return
  }
  func.func @transform_0(%arg0: i32, %arg1: i32) -> (i32, i32) {
    %c0_i32 = arith.constant 0 : i32
    %c0_i32_0 = arith.constant 0 : i32
    return %arg0, %c0_i32 : i32, i32
  }
  func.func @transform_1(%arg0: i32, %arg1: i32) -> (i32, i32) {
    %c0_i32 = arith.constant 0 : i32
    %c0_i32_0 = arith.constant 0 : i32
    return %c0_i32, %arg1 : i32, i32
  }
  func.func @transform_2(%arg0: i32, %arg1: i32) -> (i32, i32) {
    %c0_i32 = arith.constant 0 : i32
    %c0_i32_0 = arith.constant 0 : i32
    return %c0_i32, %arg1 : i32, i32
  }
  func.func @transform_3(%arg0: i32, %arg1: i32) -> (i32, i32) {
    %c0_i32 = arith.constant 0 : i32
    return %arg0, %arg1 : i32, i32
  }
}

</mosaic_0001>

<llo_original>
// kernel: tpu_custom_call.1
$region0: #{tpu_custom_call.1}
  #allocation0 [shape = 'u32[]', space=smem, size = 0x4, offset = 0x4, fixed_abs, tag = 'smem constant byte address 0x4 - core index']
  #allocation1 [shape = 'u32[72,128]{1,0:T(1,128)}', space=vmem, size = 0x9000, scoped, tag = 'internal scratch']
  %s0 = inlined_call_operand.hbm [shape: f32[18,32], index: 0, kind: input, shape index: {}]
  %s1 = inlined_call_operand.hbm [shape: f32[32,128], index: 1, kind: input, shape index: {}]
  %s2 = inlined_call_operand.vmem [shape: f32[1,128], index: 2, kind: input, shape index: {}]
  %s3 = inlined_call_operand.hbm [shape: f32[18,128], index: 3, kind: output, shape index: {}]
  %s4 = sld [smem:[#allocation0]]
  $region30: #{tpu_custom_call.1} parent=0
    _
  %s6 = ssub.s32 1, %s4
  %s7 = scalar_select 0, %s6, %s4
  $region1: #{tpu_custom_call.1} parent=0
    #allocation2 [shape = 'u8[12288]{0}', space=vmem, size = 0x3000, scoped, tag = 'input window, operand 0, single buffered']
    #allocation3 [shape = 's32[1]{0}', space=sflag, size = 0x4, scoped, tag = 'scoped memory for tpu_custom_call.1']
    #allocation4 [shape = 's32[1]{0}', space=sflag, size = 0x4, scoped, tag = 'scoped memory for tpu_custom_call.1']
    #allocation5 [shape = 'u8[16384]{0}', space=vmem, size = 0x4000, scoped, tag = 'input window, operand 1, single buffered']
    #allocation6 [shape = 's32[1]{0}', space=sflag, size = 0x4, scoped, tag = 'scoped memory for tpu_custom_call.1']
    #allocation7 [shape = 'u8[12288]{0}', space=vmem, size = 0x3000, scoped, tag = 'output window, operand 0, single buffered']
    %8 = vsyncpa [#allocation3], 0
    %9 = vsyncpa [#allocation6], 0
    %10 = vsyncpa [#allocation4], 0
    // Predicated region
    $region2: #{tpu_custom_call.1} parent=1 // pred_check
      _
    $region3: #{tpu_custom_call.1} parent=1 // pred_check_branch
      %12 = sbr.rel (0) target = $region5
    $region4: #{tpu_custom_call.1} parent=1 // pred_region
      %14 = vsyncadd [#allocation3], 0
      %s15 = sshll.u32 %s0, 4
      %s16 = int_to_ptr.hbm [resolvable:$true] %s15
      %s17 = sshll.u32 [#allocation2], 4
      %s18 = int_to_ptr.vmem [resolvable:$true] %s17
      %23 = dma.hbm_to_vmem [thread:$0]  %s16, 384, %s18, [#allocation3], 128, 128, 8
    $region5: #{tpu_custom_call.1} parent=1 // pred_fallthru
      _
    // Predicated region
    $region6: #{tpu_custom_call.1} parent=1 // pred_check
      _
    $region7: #{tpu_custom_call.1} parent=1 // pred_check_branch
      %25 = sbr.rel (0) target = $region9
    $region8: #{tpu_custom_call.1} parent=1 // pred_region
      %27 = vsyncadd [#allocation6], 0
      %s28 = sshll.u32 %s1, 4
      %s29 = int_to_ptr.hbm [resolvable:$true] %s28
      %s30 = sshll.u32 [#allocation5], 4
      %s31 = int_to_ptr.vmem [resolvable:$true] %s30
      %36 = dma.hbm_to_vmem [thread:$0]  %s29, 512, %s31, [#allocation6], 128, 128, 8
    $region9: #{tpu_custom_call.1} parent=1 // pred_fallthru
      _
    // Predicated region
    $region10: #{tpu_custom_call.1} parent=1 // pred_check
      _
    $region11: #{tpu_custom_call.1} parent=1 // pred_check_branch
      %38 = sbr.rel (0) target = $region13
    $region12: #{tpu_custom_call.1} parent=1 // pred_region
      _
    $region13: #{tpu_custom_call.1} parent=1 // pred_fallthru
      _
    // Predicated region
    $region14: #{tpu_custom_call.1} parent=1 // pred_check
      _
    $region15: #{tpu_custom_call.1} parent=1 // pred_check_branch
      %40 = sbr.rel (0) target = $region17
    $region16: #{tpu_custom_call.1} parent=1 // pred_region
      %42 = dma.done [#allocation3], 384
    $region17: #{tpu_custom_call.1} parent=1 // pred_fallthru
      _
    // Predicated region
    $region18: #{tpu_custom_call.1} parent=1 // pred_check
      _
    $region19: #{tpu_custom_call.1} parent=1 // pred_check_branch
      %44 = sbr.rel (0) target = $region21
    $region20: #{tpu_custom_call.1} parent=1 // pred_region
      %46 = dma.done [#allocation6], 512
    $region21: #{tpu_custom_call.1} parent=1 // pred_fallthru
      _
    %v47 = vld [vmem:[#allocation2] sm:$0xff]
    %v48 = vld [vmem:[#allocation2 + $0x8] sm:$0xff]
    %v49 = vld [vmem:[#allocation2 + $0x10] sm:$0x3]
    %v50 = vld [vmem:[#allocation5] sm:$0xff]
    %v51 = vld [vmem:[#allocation5 + $0x8] sm:$0xff]
    %v52 = vld [vmem:[#allocation5 + $0x10] sm:$0xff]
    %v53 = vld [vmem:[#allocation5 + $0x18] sm:$0xff]
    %v54 = vld [vmem:[%s2] sm:$0x1]
    %v56 = vperm.slane %v54, 0
    %vm58 = vcmask 261120
    %v60 = vsel %vm58, %v47, 0
    %v63 = vsel %vm58, %v48, 0
    %v66 = vsel %vm58, %v49, 0
    %68 = vmatpush.msra.mxu0 0.0
    %69 = vmatpush.msra.mxu0 0.0
    %70 = vmatpush.msra.mxu0 0.0
    %71 = vmatpush.msra.mxu0 0.0
    %72 = vmatpush.msra.mxu0 0.0
    %73 = vmatpush.msra.mxu0 0.0
    %74 = vmatpush.msra.mxu0 0.0
    %75 = vmatpush.msra.mxu0 0.0
    %76 = vmatpush.msra.mxu0 0.0
    %77 = vmatpush.msra.mxu0 0.0
    %78 = vmatpush.msra.mxu0 0.0
    %79 = vmatpush.msra.mxu0 0.0
    %80 = vmatpush.msra.mxu0 %v53
    %81 = vmatpush.msra.mxu0 %v52
    %82 = vmatpush.msra.mxu0 %v51
    %83 = vmatpush.msra.mxu0 %v50
    %84 = vmatmul.f32.gmra.mxu0 %v60
    %v85 = vpop.f32.mrf.mxu0
    %v86 = vadd.f32 %v56, %v85
    %87 = vmatmul.f32.gmra.mxu0 %v63
    %v88 = vpop.f32.mrf.mxu0
    %v89 = vadd.f32 %v56, %v88
    %90 = vmatmul.f32.gmra.mxu0 %v66
    %v91 = vpop.f32.mrf.mxu0
    %v92 = vadd.f32 %v56, %v91
    %93 = vdwg.mxu0
    %94 = vst [vmem:[#allocation7] sm:$0xff] %v86
    %95 = vst [vmem:[#allocation7 + $0x8] sm:$0xff] %v89
    %96 = vst [vmem:[#allocation7 + $0x10] sm:$0x3] %v92
    // Predicated region
    $region22: #{tpu_custom_call.1} parent=1 // pred_check
      _
    $region23: #{tpu_custom_call.1} parent=1 // pred_check_branch
      %98 = sbr.rel (0) target = $region25
    $region24: #{tpu_custom_call.1} parent=1 // pred_region
      %100 = vsyncadd [#allocation4], 0
      %s101 = sshll.u32 [#allocation7], 4
      %s102 = int_to_ptr.vmem [resolvable:$true] %s101
      %s103 = sshll.u32 %s3, 4
      %s104 = int_to_ptr.hbm [resolvable:$true] %s103
      %109 = dma.vmem_to_hbm [thread:$0]  %s102, 384, %s104, [#allocation4], 128, 128, 8
    $region25: #{tpu_custom_call.1} parent=1 // pred_fallthru
      _
    // Predicated region
    $region26: #{tpu_custom_call.1} parent=1 // pred_check
      _
    $region27: #{tpu_custom_call.1} parent=1 // pred_check_branch
      %111 = sbr.rel (0) target = $region29
    $region28: #{tpu_custom_call.1} parent=1 // pred_region
      %113 = dma.done [#allocation4], 384
    $region29: #{tpu_custom_call.1} parent=1 // pred_fallthru
      _
    %114 = vsyncpa [#allocation3], 1
    %115 = vsyncpa [#allocation6], 1
    %116 = vsyncpa [#allocation4], 1

</llo_original>
